<compile_context>
chip_gen: v6e
topology: v6e:2x2x1
jax: 0.10.0
libtpu: 0.0.40
codegen_flags: <defaults>
</compile_context>

<pallas_src>
import functools
import math

import jax
import jax.numpy as jnp
from jax.experimental import pallas as pl
from jax.experimental.pallas import tpu as pltpu


def _concat_timestep_embedder_kernel(x_ref, out_ref, *, D, outdim, half,
                                     max_period):
    """ConcatTimestepEmbedderND forward for one row-tile.

    x_ref:   VMEM (tb, D)            raw conditioning values
    out_ref: VMEM (tb, D * outdim)   concatenated sinusoidal embeddings
    """
    tb = out_ref.shape[0]

    # freqs = exp(-log(max_period) * arange(half) / half), built in-kernel so
    # there is no extra HBM input / DMA for a tiny constant row.
    lane = jax.lax.broadcasted_iota(jnp.int32, (1, half), 1).astype(jnp.float32)
    freqs = jnp.exp(lane * (-math.log(max_period) / half))          # (1, half)

    x = x_ref[...].astype(jnp.float32)                              # (tb, D)

    # Static unroll over the (small) number of embedded dims.  Each iteration
    # writes two lane-aligned slices (cos block, sin block) of the output,
    # which reproduces rearrange('(b d) d2 -> b (d d2)') exactly.
    for d in range(D):
        args = x[:, d:d + 1] * freqs                                # (tb, half)
        base = d * outdim
        out_ref[:, base:base + half] = jnp.cos(args)
        out_ref[:, base + half:base + 2 * half] = jnp.sin(args)
        if outdim != 2 * half:  # odd outdim: reference appends a zero column
            out_ref[:, base + 2 * half:base + outdim] = jnp.zeros(
                (tb, outdim - 2 * half), jnp.float32)


def _pick_row_tile(B):
    """Largest 8-aligned row tile that divides B; full B when B is small."""
    if B <= 512:
        return B
    for tb in (512, 256, 128, 64, 32, 16, 8):
        if B % tb == 0:
            return tb
    return B


@functools.partial(jax.jit, static_argnames=("outdim", "max_period"))
def concat_timestep_embedder_nd(x, *, outdim, max_period=10000.0):
    """JAX/Pallas equivalent of ConcatTimestepEmbedderND(outdim).forward(x)."""
    if x.ndim == 1:
        x = x[:, None]
    assert x.ndim == 2
    B, D = x.shape
    half = outdim // 2
    tb = _pick_row_tile(B)

    kernel = functools.partial(
        _concat_timestep_embedder_kernel,
        D=D, outdim=outdim, half=half, max_period=float(max_period))

    return pl.pallas_call(
        kernel,
        out_shape=jax.ShapeDtypeStruct((B, D * outdim), jnp.float32),
        grid_spec=pl.GridSpec(
            grid=(B // tb,),
            in_specs=[pl.BlockSpec((tb, D), lambda i: (i, 0))],
            out_specs=pl.BlockSpec((tb, D * outdim), lambda i: (i, 0)),
        ),
        compiler_params=pltpu.CompilerParams(
            dimension_semantics=("parallel",)),
    )(x.astype(jnp.float32))


class ConcatTimestepEmbedderNDPallas:
    """Thin module-style wrapper matching the PyTorch class interface."""

    def __init__(self, outdim, max_period=10000.0):
        self.outdim = int(outdim)
        self.max_period = float(max_period)

    def __call__(self, x):
        return concat_timestep_embedder_nd(
            x, outdim=self.outdim, max_period=self.max_period)


def _reference(x, outdim, max_period=10000.0):
    """Pure-jnp reference (mirrors PyTorch timestep_embedding + rearranges)."""
    if x.ndim == 1:
        x = x[:, None]
    b, d = x.shape
    half = outdim // 2
    freqs = jnp.exp(
        -math.log(max_period) * jnp.arange(half, dtype=jnp.float32) / half)
    args = x.reshape(-1).astype(jnp.float32)[:, None] * freqs[None]
    emb = jnp.concatenate([jnp.cos(args), jnp.sin(args)], axis=-1)
    if outdim % 2:
        emb = jnp.concatenate([emb, jnp.zeros_like(emb[:, :1])], axis=-1)
    return emb.reshape(b, d * outdim)


if __name__ == "__main__":
    B, D, OUTDIM = 2, 2, 256   # SDXL size-conditioning: (batch, 2) @ outdim=256

    key = jax.random.PRNGKey(0)
    # conditioning values like original-size / crop coords (small positive floats)
    x = jax.random.uniform(key, (B, D), dtype=jnp.float32,
                           minval=0.0, maxval=1000.0)

    embedder = ConcatTimestepEmbedderNDPallas(OUTDIM)
    emb = embedder(x)
    jax.block_until_ready(emb)

    assert emb.shape == (B, D * OUTDIM), emb.shape

    ref = _reference(x, OUTDIM)
    max_err = float(jnp.max(jnp.abs(emb - ref)))
    assert max_err < 1e-2, f"mismatch vs reference: {max_err}"

    print("KERNEL_OK")
</pallas_src>

<mosaic_0001>
module attributes {stable_mosaic.version = 11 : i64} {
  func.func @_concat_timestep_embedder_kernel(%arg0: i32, %arg1: memref<2x2xf32, #tpu.memory_space<vmem>>, %arg2: memref<2x512xf32, #tpu.memory_space<vmem>>) attributes {dimension_semantics = [#tpu.dimension_semantics<parallel>], iteration_bounds = array<i64: 1>, scalar_prefetch = 0 : i64, scratch_operands = 0 : i64, tpu.core_type = #tpu.core_type<tc>, window_params = [{transform_indices = @transform_0, window_bounds = array<i64: 2, 2>}, {transform_indices = @transform_1, window_bounds = array<i64: 2, 512>}]} {
    %0 = tpu.iota {dimensions = array<i32: 1>} : vector<1x128xi32>
    %1 = arith.sitofp %0 : vector<1x128xi32> to vector<1x128xf32>
    %cst = arith.constant -0.0719557852 : f32
    %2 = vector.broadcast %cst : f32 to vector<1x128xf32>
    %3 = arith.mulf %1, %2 : vector<1x128xf32>
    %4 = math.exp %3 : vector<1x128xf32>
    %c0 = arith.constant 0 : index
    %c0_0 = arith.constant 0 : index
    %5 = vector.load %arg1[%c0, %c0_0] : memref<2x2xf32, #tpu.memory_space<vmem>>, vector<2x2xf32>
    %6 = vector.extract_strided_slice %5 {offsets = [0, 0], sizes = [2, 1], strides = [1, 1]} : vector<2x2xf32> to vector<2x1xf32>
    %7 = vector.broadcast %6 : vector<2x1xf32> to vector<2x128xf32>
    %8 = vector.broadcast %4 : vector<1x128xf32> to vector<2x128xf32>
    %9 = arith.mulf %7, %8 : vector<2x128xf32>
    %10 = math.cos %9 : vector<2x128xf32>
    %c0_1 = arith.constant 0 : index
    %c0_2 = arith.constant 0 : index
    %11 = vector.load %arg2[%c0_1, %c0_2] : memref<2x512xf32, #tpu.memory_space<vmem>>, vector<2x128xf32>
    tpu.vector_store %arg2[%c0_1, %c0_2], %10 {strides = array<i32>} : memref<2x512xf32, #tpu.memory_space<vmem>>, vector<2x128xf32>,
    %12 = math.sin %9 : vector<2x128xf32>
    %c0_3 = arith.constant 0 : index
    %c128 = arith.constant 128 : index
    %13 = vector.load %arg2[%c0_3, %c128] : memref<2x512xf32, #tpu.memory_space<vmem>>, vector<2x128xf32>
    tpu.vector_store %arg2[%c0_3, %c128], %12 {strides = array<i32>} : memref<2x512xf32, #tpu.memory_space<vmem>>, vector<2x128xf32>,
    %14 = vector.extract_strided_slice %5 {offsets = [0, 1], sizes = [2, 1], strides = [1, 1]} : vector<2x2xf32> to vector<2x1xf32>
    %15 = vector.broadcast %14 : vector<2x1xf32> to vector<2x128xf32>
    %16 = vector.broadcast %4 : vector<1x128xf32> to vector<2x128xf32>
    %17 = arith.mulf %15, %16 : vector<2x128xf32>
    %18 = math.cos %17 : vector<2x128xf32>
    %c0_4 = arith.constant 0 : index
    %c256 = arith.constant 256 : index
    %19 = vector.load %arg2[%c0_4, %c256] : memref<2x512xf32, #tpu.memory_space<vmem>>, vector<2x128xf32>
    tpu.vector_store %arg2[%c0_4, %c256], %18 {strides = array<i32>} : memref<2x512xf32, #tpu.memory_space<vmem>>, vector<2x128xf32>,
    %20 = math.sin %17 : vector<2x128xf32>
    %c0_5 = arith.constant 0 : index
    %c384 = arith.constant 384 : index
    %21 = vector.load %arg2[%c0_5, %c384] : memref<2x512xf32, #tpu.memory_space<vmem>>, vector<2x128xf32>
    tpu.vector_store %arg2[%c0_5, %c384], %20 {strides = array<i32>} : memref<2x512xf32, #tpu.memory_space<vmem>>, vector<2x128xf32>,
    return
  }
  func.func @transform_0(%arg0: i32) -> (i32, i32) {
    %c0_i32 = arith.constant 0 : i32
    %c0_i32_0 = arith.constant 0 : i32
    return %arg0, %c0_i32 : i32, i32
  }
  func.func @transform_1(%arg0: i32) -> (i32, i32) {
    %c0_i32 = arith.constant 0 : i32
    %c0_i32_0 = arith.constant 0 : i32
    return %arg0, %c0_i32 : i32, i32
  }
}

</mosaic_0001>

<llo_original>
// kernel: concat_timestep_embedder_nd.1
$region0: #{concat_timestep_embedder_nd.1}
  #allocation0 [shape = 'u32[]', space=smem, size = 0x4, offset = 0x4, fixed_abs, tag = 'smem constant byte address 0x4 - core index']
  #allocation1 [shape = 'u32[144,128]{1,0:T(1,128)}', space=vmem, size = 0x12000, scoped, tag = 'internal scratch']
  %s0 = inlined_call_operand.hbm [shape: f32[2,2], index: 0, kind: input, shape index: {}]
  %s1 = inlined_call_operand.hbm [shape: f32[2,512], index: 1, kind: output, shape index: {}]
  %s2 = sld [smem:[#allocation0]]
  $region18: #{concat_timestep_embedder_nd.1} parent=0
    _
  %s4 = ssub.s32 1, %s2
  %s5 = scalar_select 0, %s4, %s2
  $region1: #{concat_timestep_embedder_nd.1} parent=0
    #allocation2 [shape = 'u8[1024]{0}', space=vmem, size = 0x400, scoped, tag = 'input window, operand 0, single buffered']
    #allocation3 [shape = 's32[1]{0}', space=sflag, size = 0x4, scoped, tag = 'scoped memory for concat_timestep_embedder_nd.1']
    #allocation4 [shape = 's32[1]{0}', space=sflag, size = 0x4, scoped, tag = 'scoped memory for concat_timestep_embedder_nd.1']
    #allocation5 [shape = 'u8[4096]{0}', space=vmem, size = 0x1000, scoped, tag = 'output window, operand 0, single buffered']
    %6 = vsyncpa [#allocation3], 0
    %7 = vsyncpa [#allocation4], 0
    // Predicated region
    $region2: #{concat_timestep_embedder_nd.1} parent=1 // pred_check
      _
    $region3: #{concat_timestep_embedder_nd.1} parent=1 // pred_check_branch
      %9 = sbr.rel (0) target = $region5
    $region4: #{concat_timestep_embedder_nd.1} parent=1 // pred_region
      %s11 = ssub.s32 32, 32
      %12 = vsyncadd [#allocation3], %s11
      %s14 = sshll.u32 [#allocation2], 4
      %s15 = int_to_ptr.vmem [resolvable:$true] %s14
      %17 = dma.hbm_to_vmem [thread:$0]  %s0, 32, %s15, [#allocation3]
    $region5: #{concat_timestep_embedder_nd.1} parent=1 // pred_fallthru
      _
    // Predicated region
    $region6: #{concat_timestep_embedder_nd.1} parent=1 // pred_check
      _
    $region7: #{concat_timestep_embedder_nd.1} parent=1 // pred_check_branch
      %19 = sbr.rel (0) target = $region9
    $region8: #{concat_timestep_embedder_nd.1} parent=1 // pred_region
      %20 = dma.done [#allocation3], 32
    $region9: #{concat_timestep_embedder_nd.1} parent=1 // pred_fallthru
      _
    %v21 = vlaneseq
    %v22 = vand.u32 %v21, 127
    %v23 = vcvt.s32.f32 %v22
    %v24 = vmul.f32 %v23, -0.071955785
    %v25 = vmul.f32 %v24, 1.442695
    %v26 = vpow.pop %v25
    %v27 = vld [vmem:[#allocation2] sm:$0x3]
    %29 = vset.pattern.permute.xlu0 0
    %30 = vperm.xlu0 %29, %v27
    %v31 = vpop.permute.xlu0 %30
    %v33 = vmul.f32 %v31, %v26
    %v34 = vand.u32 2147483647, %v33
    %vm35 = vcmp.le.f32.partialorder %v34, 0.7853982
    %vm36 = vcmp.lt.s32.totalorder %v33, 0
    %v37 = vand.u32 %v33, 2139095040
    %v38 = vshrl.u32 %v37, 23
    %v39 = vsub.s32 %v38, 127
    %v40 = vand.u32 2147483647, %v33
    %v41 = vand.u32 %v40, 8388607
    %v42 = vor.u32 %v41, 8388608
    %v43 = vsub.s32 0, %v42
    %v44 = vadd.s32 %v39, 1
    %vm45 = vcmp.gt.s32.totalorder %v44, 0
    %v46 = vsel %vm45, %v44, 0
    %v47 = vshrl.u32 %v46, 5
    %v48 = vand.u32 %v46, 31
    %v49 = vsub.s32 32, %v48
    %v50 = vshrl.u32 683565275, %v49
    %v51 = vshll.u32 683565275, %v48
    %v52 = vshrl.u32 2475754826, %v49
    %v53 = vor.u32 %v51, %v52
    %v54 = vshll.u32 2475754826, %v48
    %v55 = vshrl.u32 2131351028, %v49
    %v56 = vor.u32 %v54, %v55
    %v57 = vshll.u32 2131351028, %v48
    %v58 = vshrl.u32 2102212464, %v49
    %v59 = vor.u32 %v57, %v58
    %v60 = vshll.u32 2102212464, %v48
    %v61 = vshrl.u32 920167782, %v49
    %v62 = vor.u32 %v60, %v61
    %v63 = vshll.u32 920167782, %v48
    %v64 = vshrl.u32 1326507024, %v49
    %v65 = vor.u32 %v63, %v64
    %vm66 = vcmp.lt.s32.totalorder %v47, 1
    %vm67 = vcmp.lt.s32.totalorder %v47, 2
    %vm68 = vcmp.lt.s32.totalorder %v47, 3
    %vm69 = vcmp.lt.s32.totalorder %v47, 4
    %v70 = vsel %vm66, %v50, %v53
    %v71 = vsel %vm69, %v59, 2102212464
    %v72 = vsel %vm68, %v56, %v71
    %v73 = vsel %vm67, %v70, %v72
    %v74 = vsel %vm66, %v53, %v56
    %v75 = vsel %vm69, %v62, 920167782
    %v76 = vsel %vm68, %v59, %v75
    %v77 = vsel %vm67, %v74, %v76
    %v78 = vsel %vm66, %v56, %v59
    %v79 = vsel %vm69, %v65, 1326507024
    %v80 = vsel %vm68, %v62, %v79
    %v81 = vsel %vm67, %v78, %v80
    %v82 = vshll.u32 %v42, 8
    %v83 = vmul.u32.u64.compose %v82, %v81
    %v84 = vextract.low.u32 %v83
    %v85 = vextract.high.u32 %v83
    %v86 = vmul.u32.u64.compose %v82, %v77
    %v87 = vextract.low.u32 %v86
    %v88 = vextract.high.u32 %v86
    %v89 = vmul.u32 %v82, %v73
    %v90 = vadd.s32 %v85, %v87
    %vm91 = vc.u32 %v85, %v87
    %v92 = vadd.s32 %v88, 1
    %v93 = vsel %vm91, %v92, %v88
    %v94 = vadd.s32 %v89, %v93
    %v95 = vadd.s32 %v94, 536870912
    %v96 = vshrl.u32 %v95, 30
    %v97 = vshll.u32 %v96, 30
    %v98 = vsub.s32 %v94, %v97
    %vm99 = vcmp.lt.s32.totalorder %v98, 0
    %v100 = vsub.s32 0, %v98
    %v101 = vsel %vm99, %v100, %v98
    %v102 = vclz %v101
    %v103 = vsub.s32 %v102, 2
    %vm104 = vcmp.gt.s32.totalorder 0, %v103
    %v105 = vsel %vm104, 0, %v103
    %v106 = vsub.s32 32, %v105
    %v107 = vshll.u32 %v98, %v105
    %v108 = vshrl.u32 %v90, %v106
    %v109 = vor.u32 %v107, %v108
    %v110 = vsub.s32 4294967266, %v105
    %v111 = vadd.s32 %v110, 127
    %v112 = vshll.u32 %v111, 23
    %v113 = vor.u32 4788187, %v112
    %v114 = vand.u32 2147483647, %v113
    %v116 = vcvt.s32.f32 %v109
    %v117 = vmul.f32 %v116, %v114
    %v118 = vxor.u32 %v117, 2147483648
    %v119 = vsel %vm36, %v118, %v117
    %v120 = vsub.s32 4, %v96
    %v121 = vsel %vm36, %v120, %v96
    %v122 = vsel %vm35, %v33, %v119
    %v123 = vsel %vm35, 0, %v121
    %v124 = vcosq.f32.pop %v122
    %v125 = vsinq.f32.pop %v122
    %vm126 = vweird.f32 %v33
    %v127 = vand.u32 %v123, 3
    %vm128 = vcmp.lt.s32.totalorder %v127, 2
    %vm129 = vcmp.eq.s32.totalorder %v127, 0
    %v130 = vxor.u32 %v125, 2147483648
    %v131 = vsel %vm129, %v124, %v130
    %vm132 = vcmp.eq.s32.totalorder %v127, 2
    %v133 = vxor.u32 %v124, 2147483648
    %v134 = vsel %vm132, %v133, %v125
    %v135 = vsel %vm128, %v131, %v134
    %v136 = vsel %vm126, nan, %v135
    %137 = vst [vmem:[#allocation5] sm:$0x3] %v136
    %v138 = vand.u32 2147483647, %v33
    %vm139 = vcmp.le.f32.partialorder %v138, 0.7853982
    %vm140 = vcmp.lt.s32.totalorder %v33, 0
    %v141 = vand.u32 %v33, 2139095040
    %v142 = vshrl.u32 %v141, 23
    %v143 = vsub.s32 %v142, 127
    %v144 = vand.u32 2147483647, %v33
    %v145 = vand.u32 %v144, 8388607
    %v146 = vor.u32 %v145, 8388608
    %v147 = vsub.s32 0, %v146
    %v148 = vadd.s32 %v143, 1
    %vm149 = vcmp.gt.s32.totalorder %v148, 0
    %v150 = vsel %vm149, %v148, 0
    %v151 = vshrl.u32 %v150, 5
    %v152 = vand.u32 %v150, 31
    %v153 = vsub.s32 32, %v152
    %v154 = vshrl.u32 683565275, %v153
    %v155 = vshll.u32 683565275, %v152
    %v156 = vshrl.u32 2475754826, %v153
    %v157 = vor.u32 %v155, %v156
    %v158 = vshll.u32 2475754826, %v152
    %v159 = vshrl.u32 2131351028, %v153
    %v160 = vor.u32 %v158, %v159
    %v161 = vshll.u32 2131351028, %v152
    %v162 = vshrl.u32 2102212464, %v153
    %v163 = vor.u32 %v161, %v162
    %v164 = vshll.u32 2102212464, %v152
    %v165 = vshrl.u32 920167782, %v153
    %v166 = vor.u32 %v164, %v165
    %v167 = vshll.u32 920167782, %v152
    %v168 = vshrl.u32 1326507024, %v153
    %v169 = vor.u32 %v167, %v168
    %vm170 = vcmp.lt.s32.totalorder %v151, 1
    %vm171 = vcmp.lt.s32.totalorder %v151, 2
    %vm172 = vcmp.lt.s32.totalorder %v151, 3
    %vm173 = vcmp.lt.s32.totalorder %v151, 4
    %v174 = vsel %vm170, %v154, %v157
    %v175 = vsel %vm173, %v163, 2102212464
    %v176 = vsel %vm172, %v160, %v175
    %v177 = vsel %vm171, %v174, %v176
    %v178 = vsel %vm170, %v157, %v160
    %v179 = vsel %vm173, %v166, 920167782
    %v180 = vsel %vm172, %v163, %v179
    %v181 = vsel %vm171, %v178, %v180
    %v182 = vsel %vm170, %v160, %v163
    %v183 = vsel %vm173, %v169, 1326507024
    %v184 = vsel %vm172, %v166, %v183
    %v185 = vsel %vm171, %v182, %v184
    %v186 = vshll.u32 %v146, 8
    %v187 = vmul.u32.u64.compose %v186, %v185
    %v188 = vextract.low.u32 %v187
    %v189 = vextract.high.u32 %v187
    %v190 = vmul.u32.u64.compose %v186, %v181
    %v191 = vextract.low.u32 %v190
    %v192 = vextract.high.u32 %v190
    %v193 = vmul.u32 %v186, %v177
    %v194 = vadd.s32 %v189, %v191
    %vm195 = vc.u32 %v189, %v191
    %v196 = vadd.s32 %v192, 1
    %v197 = vsel %vm195, %v196, %v192
    %v198 = vadd.s32 %v193, %v197
    %v199 = vadd.s32 %v198, 536870912
    %v200 = vshrl.u32 %v199, 30
    %v201 = vshll.u32 %v200, 30
    %v202 = vsub.s32 %v198, %v201
    %vm203 = vcmp.lt.s32.totalorder %v202, 0
    %v204 = vsub.s32 0, %v202
    %v205 = vsel %vm203, %v204, %v202
    %v206 = vclz %v205
    %v207 = vsub.s32 %v206, 2
    %vm208 = vcmp.gt.s32.totalorder 0, %v207
    %v209 = vsel %vm208, 0, %v207
    %v210 = vsub.s32 32, %v209
    %v211 = vshll.u32 %v202, %v209
    %v212 = vshrl.u32 %v194, %v210
    %v213 = vor.u32 %v211, %v212
    %v214 = vsub.s32 4294967266, %v209
    %v215 = vadd.s32 %v214, 127
    %v216 = vshll.u32 %v215, 23
    %v217 = vor.u32 4788187, %v216
    %v218 = vand.u32 2147483647, %v217
    %v220 = vcvt.s32.f32 %v213
    %v221 = vmul.f32 %v220, %v218
    %v222 = vxor.u32 %v221, 2147483648
    %v223 = vsel %vm140, %v222, %v221
    %v224 = vsub.s32 4, %v200
    %v225 = vsel %vm140, %v224, %v200
    %v226 = vsel %vm139, %v33, %v223
    %v227 = vsel %vm139, 0, %v225
    %v228 = vcosq.f32.pop %v226
    %v229 = vsinq.f32.pop %v226
    %vm230 = vweird.f32 %v33
    %v231 = vadd.s32 %v227, 3
    %v232 = vand.u32 %v231, 3
    %vm233 = vcmp.lt.s32.totalorder %v232, 2
    %vm234 = vcmp.eq.s32.totalorder %v232, 0
    %v235 = vxor.u32 %v229, 2147483648
    %v236 = vsel %vm234, %v228, %v235
    %vm237 = vcmp.eq.s32.totalorder %v232, 2
    %v238 = vxor.u32 %v228, 2147483648
    %v239 = vsel %vm237, %v238, %v229
    %v240 = vsel %vm233, %v236, %v239
    %v241 = vsel %vm230, nan, %v240
    %242 = vst [vmem:[#allocation5 + $0x2] sm:$0x3] %v241
    %243 = vset.pattern.permute.xlu0 1
    %244 = vperm.xlu0 %243, %v27
    %v245 = vpop.permute.xlu0 %244
    %v247 = vmul.f32 %v245, %v26
    %v248 = vand.u32 2147483647, %v247
    %vm249 = vcmp.le.f32.partialorder %v248, 0.7853982
    %vm250 = vcmp.lt.s32.totalorder %v247, 0
    %v251 = vand.u32 %v247, 2139095040
    %v252 = vshrl.u32 %v251, 23
    %v253 = vsub.s32 %v252, 127
    %v254 = vand.u32 2147483647, %v247
    %v255 = vand.u32 %v254, 8388607
    %v256 = vor.u32 %v255, 8388608
    %v257 = vsub.s32 0, %v256
    %v258 = vadd.s32 %v253, 1
    %vm259 = vcmp.gt.s32.totalorder %v258, 0
    %v260 = vsel %vm259, %v258, 0
    %v261 = vshrl.u32 %v260, 5
    %v262 = vand.u32 %v260, 31
    %v263 = vsub.s32 32, %v262
    %v264 = vshrl.u32 683565275, %v263
    %v265 = vshll.u32 683565275, %v262
    %v266 = vshrl.u32 2475754826, %v263
    %v267 = vor.u32 %v265, %v266
    %v268 = vshll.u32 2475754826, %v262
    %v269 = vshrl.u32 2131351028, %v263
    %v270 = vor.u32 %v268, %v269
    %v271 = vshll.u32 2131351028, %v262
    %v272 = vshrl.u32 2102212464, %v263
    %v273 = vor.u32 %v271, %v272
    %v274 = vshll.u32 2102212464, %v262
    %v275 = vshrl.u32 920167782, %v263
    %v276 = vor.u32 %v274, %v275
    %v277 = vshll.u32 920167782, %v262
    %v278 = vshrl.u32 1326507024, %v263
    %v279 = vor.u32 %v277, %v278
    %vm280 = vcmp.lt.s32.totalorder %v261, 1
    %vm281 = vcmp.lt.s32.totalorder %v261, 2
    %vm282 = vcmp.lt.s32.totalorder %v261, 3
    %vm283 = vcmp.lt.s32.totalorder %v261, 4
    %v284 = vsel %vm280, %v264, %v267
    %v285 = vsel %vm283, %v273, 2102212464
    %v286 = vsel %vm282, %v270, %v285
    %v287 = vsel %vm281, %v284, %v286
    %v288 = vsel %vm280, %v267, %v270
    %v289 = vsel %vm283, %v276, 920167782
    %v290 = vsel %vm282, %v273, %v289
    %v291 = vsel %vm281, %v288, %v290
    %v292 = vsel %vm280, %v270, %v273
    %v293 = vsel %vm283, %v279, 1326507024
    %v294 = vsel %vm282, %v276, %v293
    %v295 = vsel %vm281, %v292, %v294
    %v296 = vshll.u32 %v256, 8
    %v297 = vmul.u32.u64.compose %v296, %v295
    %v298 = vextract.low.u32 %v297
    %v299 = vextract.high.u32 %v297
    %v300 = vmul.u32.u64.compose %v296, %v291
    %v301 = vextract.low.u32 %v300
    %v302 = vextract.high.u32 %v300
    %v303 = vmul.u32 %v296, %v287
    %v304 = vadd.s32 %v299, %v301
    %vm305 = vc.u32 %v299, %v301
    %v306 = vadd.s32 %v302, 1
    %v307 = vsel %vm305, %v306, %v302
    %v308 = vadd.s32 %v303, %v307
    %v309 = vadd.s32 %v308, 536870912
    %v310 = vshrl.u32 %v309, 30
    %v311 = vshll.u32 %v310, 30
    %v312 = vsub.s32 %v308, %v311
    %vm313 = vcmp.lt.s32.totalorder %v312, 0
    %v314 = vsub.s32 0, %v312
    %v315 = vsel %vm313, %v314, %v312
    %v316 = vclz %v315
    %v317 = vsub.s32 %v316, 2
    %vm318 = vcmp.gt.s32.totalorder 0, %v317
    %v319 = vsel %vm318, 0, %v317
    %v320 = vsub.s32 32, %v319
    %v321 = vshll.u32 %v312, %v319
    %v322 = vshrl.u32 %v304, %v320
    %v323 = vor.u32 %v321, %v322
    %v324 = vsub.s32 4294967266, %v319
    %v325 = vadd.s32 %v324, 127
    %v326 = vshll.u32 %v325, 23
    %v327 = vor.u32 4788187, %v326
    %v328 = vand.u32 2147483647, %v327
    %v330 = vcvt.s32.f32 %v323
    %v331 = vmul.f32 %v330, %v328
    %v332 = vxor.u32 %v331, 2147483648
    %v333 = vsel %vm250, %v332, %v331
    %v334 = vsub.s32 4, %v310
    %v335 = vsel %vm250, %v334, %v310
    %v336 = vsel %vm249, %v247, %v333
    %v337 = vsel %vm249, 0, %v335
    %v338 = vcosq.f32.pop %v336
    %v339 = vsinq.f32.pop %v336
    %vm340 = vweird.f32 %v247
    %v341 = vand.u32 %v337, 3
    %vm342 = vcmp.lt.s32.totalorder %v341, 2
    %vm343 = vcmp.eq.s32.totalorder %v341, 0
    %v344 = vxor.u32 %v339, 2147483648
    %v345 = vsel %vm343, %v338, %v344
    %vm346 = vcmp.eq.s32.totalorder %v341, 2
    %v347 = vxor.u32 %v338, 2147483648
    %v348 = vsel %vm346, %v347, %v339
    %v349 = vsel %vm342, %v345, %v348
    %v350 = vsel %vm340, nan, %v349
    %351 = vst [vmem:[#allocation5 + $0x4] sm:$0x3] %v350
    %v352 = vand.u32 2147483647, %v247
    %vm353 = vcmp.le.f32.partialorder %v352, 0.7853982
    %vm354 = vcmp.lt.s32.totalorder %v247, 0
    %v355 = vand.u32 %v247, 2139095040
    %v356 = vshrl.u32 %v355, 23
    %v357 = vsub.s32 %v356, 127
    %v358 = vand.u32 2147483647, %v247
    %v359 = vand.u32 %v358, 8388607
    %v360 = vor.u32 %v359, 8388608
    %v361 = vsub.s32 0, %v360
    %v362 = vadd.s32 %v357, 1
    %vm363 = vcmp.gt.s32.totalorder %v362, 0
    %v364 = vsel %vm363, %v362, 0
    %v365 = vshrl.u32 %v364, 5
    %v366 = vand.u32 %v364, 31
    %v367 = vsub.s32 32, %v366
    %v368 = vshrl.u32 683565275, %v367
    %v369 = vshll.u32 683565275, %v366
    %v370 = vshrl.u32 2475754826, %v367
    %v371 = vor.u32 %v369, %v370
    %v372 = vshll.u32 2475754826, %v366
    %v373 = vshrl.u32 2131351028, %v367
    %v374 = vor.u32 %v372, %v373
    %v375 = vshll.u32 2131351028, %v366
    %v376 = vshrl.u32 2102212464, %v367
    %v377 = vor.u32 %v375, %v376
    %v378 = vshll.u32 2102212464, %v366
    %v379 = vshrl.u32 920167782, %v367
    %v380 = vor.u32 %v378, %v379
    %v381 = vshll.u32 920167782, %v366
    %v382 = vshrl.u32 1326507024, %v367
    %v383 = vor.u32 %v381, %v382
    %vm384 = vcmp.lt.s32.totalorder %v365, 1
    %vm385 = vcmp.lt.s32.totalorder %v365, 2
    %vm386 = vcmp.lt.s32.totalorder %v365, 3
    %vm387 = vcmp.lt.s32.totalorder %v365, 4
    %v388 = vsel %vm384, %v368, %v371
    %v389 = vsel %vm387, %v377, 2102212464
    %v390 = vsel %vm386, %v374, %v389
    %v391 = vsel %vm385, %v388, %v390
    %v392 = vsel %vm384, %v371, %v374
    %v393 = vsel %vm387, %v380, 920167782
    %v394 = vsel %vm386, %v377, %v393
    %v395 = vsel %vm385, %v392, %v394
    %v396 = vsel %vm384, %v374, %v377
    %v397 = vsel %vm387, %v383, 1326507024
    %v398 = vsel %vm386, %v380, %v397
    %v399 = vsel %vm385, %v396, %v398
    %v400 = vshll.u32 %v360, 8
    %v401 = vmul.u32.u64.compose %v400, %v399
    %v402 = vextract.low.u32 %v401
    %v403 = vextract.high.u32 %v401
    %v404 = vmul.u32.u64.compose %v400, %v395
    %v405 = vextract.low.u32 %v404
    %v406 = vextract.high.u32 %v404
    %v407 = vmul.u32 %v400, %v391
    %v408 = vadd.s32 %v403, %v405
    %vm409 = vc.u32 %v403, %v405
    %v410 = vadd.s32 %v406, 1
    %v411 = vsel %vm409, %v410, %v406
    %v412 = vadd.s32 %v407, %v411
    %v413 = vadd.s32 %v412, 536870912
    %v414 = vshrl.u32 %v413, 30
    %v415 = vshll.u32 %v414, 30
    %v416 = vsub.s32 %v412, %v415
    %vm417 = vcmp.lt.s32.totalorder %v416, 0
    %v418 = vsub.s32 0, %v416
    %v419 = vsel %vm417, %v418, %v416
    %v420 = vclz %v419
    %v421 = vsub.s32 %v420, 2
    %vm422 = vcmp.gt.s32.totalorder 0, %v421
    %v423 = vsel %vm422, 0, %v421
    %v424 = vsub.s32 32, %v423
    %v425 = vshll.u32 %v416, %v423
    %v426 = vshrl.u32 %v408, %v424
    %v427 = vor.u32 %v425, %v426
    %v428 = vsub.s32 4294967266, %v423
    %v429 = vadd.s32 %v428, 127
    %v430 = vshll.u32 %v429, 23
    %v431 = vor.u32 4788187, %v430
    %v432 = vand.u32 2147483647, %v431
    %v434 = vcvt.s32.f32 %v427
    %v435 = vmul.f32 %v434, %v432
    %v436 = vxor.u32 %v435, 2147483648
    %v437 = vsel %vm354, %v436, %v435
    %v438 = vsub.s32 4, %v414
    %v439 = vsel %vm354, %v438, %v414
    %v440 = vsel %vm353, %v247, %v437
    %v441 = vsel %vm353, 0, %v439
    %v442 = vcosq.f32.pop %v440
    %v443 = vsinq.f32.pop %v440
    %vm444 = vweird.f32 %v247
    %v445 = vadd.s32 %v441, 3
    %v446 = vand.u32 %v445, 3
    %vm447 = vcmp.lt.s32.totalorder %v446, 2
    %vm448 = vcmp.eq.s32.totalorder %v446, 0
    %v449 = vxor.u32 %v443, 2147483648
    %v450 = vsel %vm448, %v442, %v449
    %vm451 = vcmp.eq.s32.totalorder %v446, 2
    %v452 = vxor.u32 %v442, 2147483648
    %v453 = vsel %vm451, %v452, %v443
    %v454 = vsel %vm447, %v450, %v453
    %v455 = vsel %vm444, nan, %v454
    %456 = vst [vmem:[#allocation5 + $0x6] sm:$0x3] %v455
    // Predicated region
    $region10: #{concat_timestep_embedder_nd.1} parent=1 // pred_check
      _
    $region11: #{concat_timestep_embedder_nd.1} parent=1 // pred_check_branch
      %458 = sbr.rel (0) target = $region13
    $region12: #{concat_timestep_embedder_nd.1} parent=1 // pred_region
      %s460 = ssub.s32 128, 128
      %461 = vsyncadd [#allocation4], %s460
      %s463 = sshll.u32 [#allocation5], 4
      %s464 = int_to_ptr.vmem [resolvable:$true] %s463
      %466 = dma.vmem_to_hbm [thread:$0]  %s464, 128, %s1, [#allocation4]
    $region13: #{concat_timestep_embedder_nd.1} parent=1 // pred_fallthru
      _
    // Predicated region
    $region14: #{concat_timestep_embedder_nd.1} parent=1 // pred_check
      _
    $region15: #{concat_timestep_embedder_nd.1} parent=1 // pred_check_branch
      %468 = sbr.rel (0) target = $region17
    $region16: #{concat_timestep_embedder_nd.1} parent=1 // pred_region
      %469 = dma.done [#allocation4], 128
    $region17: #{concat_timestep_embedder_nd.1} parent=1 // pred_fallthru
      _
    %470 = vsyncpa [#allocation3], 1
    %471 = vsyncpa [#allocation4], 1

</llo_original>
